<compile_context>
chip_gen: v7x
topology: tpu7x:2x2x1
jax: 0.10.0
libtpu: 0.0.40
codegen_flags: <defaults>
</compile_context>

<pallas_src>
import functools

import numpy as np
import jax
import jax.numpy as jnp
from jax.experimental import pallas as pl
from jax.experimental.pallas import tpu as pltpu


_VMEM_LIMIT = 48 * 1024 * 1024  # below v7x physical 64 MiB; generous on v5e/v6e


# ------------------------------- math helpers --------------------------------

def _erf_f32(x):
    # Abramowitz & Stegun 7.1.26 polynomial, |err| <= 1.5e-7 in f32 — exact-GELU
    # semantics to far below bf16 precision, built only from ops guaranteed to
    # lower in Mosaic (exp / mul / add / div / where).
    a1, a2, a3, a4, a5 = (0.254829592, -0.284496736, 1.421413741,
                          -1.453152027, 1.061405429)
    p = 0.3275911
    z = jnp.abs(x)
    t = 1.0 / (1.0 + p * z)
    poly = ((((a5 * t + a4) * t + a3) * t + a2) * t + a1) * t
    e = 1.0 - poly * jnp.exp(-z * z)
    return jnp.where(x < 0.0, -e, e)


def _gelu_exact(x):
    # matches torch.nn.functional.gelu (non-approximate) to ~1e-7
    return x * 0.5 * (1.0 + _erf_f32(x * 0.7071067811865476))


# ----------------------------- Pallas kernels --------------------------------

def _linear_kernel(*refs, activation, has_residual):
    """y = act(x @ w + b) (+ residual) for one (tm, tn) tile; K is full-extent."""
    if has_residual:
        x_ref, w_ref, b_ref, r_ref, o_ref = refs
    else:
        x_ref, w_ref, b_ref, o_ref = refs
        r_ref = None

    y = jnp.dot(x_ref[...], w_ref[...], preferred_element_type=jnp.float32)
    y = y + b_ref[...].astype(jnp.float32)
    if activation == "gelu":
        y = _gelu_exact(y)
    if r_ref is not None:
        y = y + r_ref[...].astype(jnp.float32)
    o_ref[...] = y.astype(o_ref.dtype)


def pallas_linear(x, w, b, residual=None, activation="none", out_dtype=None,
                  tm=512, tn=1024):
    """y = act(x @ w + b) (+ residual).  x:(M,K) w:(K,N) b:(N,) -> (M,N).

    Ragged M / N are handled by pl.cdiv grids (Pallas masks the partial last
    block); K stays full-extent (largest K in this model is the MLP width)."""
    M, K = x.shape
    K2, N = w.shape
    assert K == K2
    out_dtype = out_dtype or x.dtype
    tm = int(min(tm, M))
    tn = int(min(tn, N))
    grid = (pl.cdiv(M, tm), pl.cdiv(N, tn))

    in_specs = [pl.BlockSpec((tm, K), lambda i, j: (i, 0)),
                pl.BlockSpec((K, tn), lambda i, j: (0, j)),
                pl.BlockSpec((1, tn), lambda i, j: (0, j))]
    args = [x, w, b.reshape(1, N)]
    if residual is not None:
        in_specs.append(pl.BlockSpec((tm, tn), lambda i, j: (i, j)))
        args.append(residual)

    out_isz = np.dtype(out_dtype).itemsize
    bytes_accessed = int(x.size * x.dtype.itemsize + w.size * w.dtype.itemsize
                         + b.size * b.dtype.itemsize + M * N * out_isz)
    if residual is not None:
        bytes_accessed += int(residual.size * residual.dtype.itemsize)
    transcendentals = int(M * N) if activation == "gelu" else 0

    kernel = functools.partial(_linear_kernel, activation=activation,
                               has_residual=residual is not None)
    return pl.pallas_call(
        kernel,
        out_shape=jax.ShapeDtypeStruct((M, N), out_dtype),
        grid=grid,
        in_specs=in_specs,
        out_specs=pl.BlockSpec((tm, tn), lambda i, j: (i, j)),
        compiler_params=pltpu.CompilerParams(
            dimension_semantics=("parallel", "parallel"),
            vmem_limit_bytes=_VMEM_LIMIT),
        cost_estimate=pl.CostEstimate(flops=int(2 * M * N * K),
                                      transcendentals=transcendentals,
                                      bytes_accessed=bytes_accessed),
    )(*args)


def _ln_linear_kernel(x_ref, g_ref, bln_ref, w_ref, b_ref, o_ref, xn_ref, *,
                      eps, activation):
    """Fused LayerNorm (f32 stats) -> matmul (bf16, f32 acc) -> bias (+gelu).

    The normalized rows are computed once per row tile (j == 0) and cached in a
    VMEM scratch so they are NOT recomputed for every N tile."""
    @pl.when(pl.program_id(1) == 0)
    def _():
        x = x_ref[...].astype(jnp.float32)
        mean = jnp.mean(x, axis=-1, keepdims=True)
        var = jnp.mean(jnp.square(x - mean), axis=-1, keepdims=True)
        xn = (x - mean) * jax.lax.rsqrt(var + eps)
        xn = xn * g_ref[...].astype(jnp.float32) + bln_ref[...].astype(jnp.float32)
        xn_ref[...] = xn.astype(xn_ref.dtype)

    y = jnp.dot(xn_ref[...], w_ref[...], preferred_element_type=jnp.float32)
    y = y + b_ref[...].astype(jnp.float32)
    if activation == "gelu":
        y = _gelu_exact(y)
    o_ref[...] = y.astype(o_ref.dtype)


def pallas_ln_linear(x, gamma, beta, w, b, activation="none", out_dtype=None,
                     eps=1e-6, tm=512, tn=1024):
    """y = act(LayerNorm(x) @ w + b); LN fused as the matmul prologue.
    The LN reduction needs the whole feature dim, so K stays un-tiled."""
    M, K = x.shape
    K2, N = w.shape
    assert K == K2
    out_dtype = out_dtype or x.dtype
    tm = int(min(tm, M))
    tn = int(min(tn, N))
    grid = (pl.cdiv(M, tm), pl.cdiv(N, tn))

    out_isz = np.dtype(out_dtype).itemsize
    bytes_accessed = int(x.size * x.dtype.itemsize + w.size * w.dtype.itemsize
                         + 2 * K * 4 + b.size * b.dtype.itemsize + M * N * out_isz)
    transcendentals = int(M * N) if activation == "gelu" else int(M)

    kernel = functools.partial(_ln_linear_kernel, eps=eps, activation=activation)
    return pl.pallas_call(
        kernel,
        out_shape=jax.ShapeDtypeStruct((M, N), out_dtype),
        grid=grid,
        in_specs=[pl.BlockSpec((tm, K), lambda i, j: (i, 0)),
                  pl.BlockSpec((1, K), lambda i, j: (0, 0)),
                  pl.BlockSpec((1, K), lambda i, j: (0, 0)),
                  pl.BlockSpec((K, tn), lambda i, j: (0, j)),
                  pl.BlockSpec((1, tn), lambda i, j: (0, j))],
        out_specs=pl.BlockSpec((tm, tn), lambda i, j: (i, j)),
        scratch_shapes=[pltpu.VMEM((tm, K), w.dtype)],     # cached normalized rows
        compiler_params=pltpu.CompilerParams(
            # j must be "arbitrary": the xn cache is filled at j == 0.
            dimension_semantics=("parallel", "arbitrary"),
            vmem_limit_bytes=_VMEM_LIMIT),
        cost_estimate=pl.CostEstimate(flops=int(2 * M * N * K + 8 * M * K),
                                      transcendentals=transcendentals,
                                      bytes_accessed=bytes_accessed),
    )(x, gamma.reshape(1, K).astype(jnp.float32),
      beta.reshape(1, K).astype(jnp.float32), w, b.reshape(1, N))


def _attention_kernel(qkv_ref, o_ref, *, num_heads, scale):
    """Multi-head SDPA on a block of batch rows; heads split in-kernel.

    Each head's context is written straight into its output slice as soon as it
    is computed, so only one (bblk, S, dh) f32 context is live at a time."""
    D = o_ref.shape[-1]
    dh = D // num_heads
    qkv = qkv_ref[...]                                  # (bblk, S, 3D) bf16
    for h in range(num_heads):                          # static unroll over heads
        q = qkv[:, :, h * dh:(h + 1) * dh]
        k = qkv[:, :, D + h * dh:D + (h + 1) * dh]
        v = qkv[:, :, 2 * D + h * dh:2 * D + (h + 1) * dh]
        s = jax.lax.dot_general(q, k, (((2,), (2,)), ((0,), (0,))),
                                preferred_element_type=jnp.float32) * scale
        s = s - jnp.max(s, axis=-1, keepdims=True)      # numerically-stable softmax
        p = jnp.exp(s)
        p = p * pl.reciprocal(jnp.sum(p, axis=-1, keepdims=True), approx=True)
        ctx = jax.lax.dot_general(p.astype(v.dtype), v, (((2,), (1,)), ((0,), (0,))),
                                  preferred_element_type=jnp.float32)
        o_ref[:, :, h * dh:(h + 1) * dh] = ctx.astype(o_ref.dtype)


def pallas_attention(qkv, num_heads, bblk=None):
    """softmax(q k^T * scale) v.  qkv:(B, S, 3*D) packed exactly like the HF
    fused QKV projection (q|k|v, each laid out [heads, head_dim]).

    bblk is picked so one QKV block is ~<= 4 MiB (double-buffered 8 MiB) —
    large for tiny-S temporal attention (amortizes grid-step overhead), small
    for the 197-token spatial attention (VMEM-safe on v7x's 64 MiB)."""
    B_, S, D3 = qkv.shape
    D = D3 // 3
    dh = D // num_heads
    if bblk is None:
        budget = 4 * 1024 * 1024
        bblk = max(1, budget // (S * D3 * qkv.dtype.itemsize))
    bblk = int(min(bblk, B_, 128))
    grid = (pl.cdiv(B_, bblk),)

    # TODO(synk): for the real config (S=197, dh=64) add key padding/masking to
    # 256 lanes and process heads in 128-lane pairs; not needed at test shapes.
    bytes_accessed = int(qkv.size * qkv.dtype.itemsize
                         + B_ * S * D * qkv.dtype.itemsize)
    return pl.pallas_call(
        functools.partial(_attention_kernel, num_heads=num_heads, scale=dh ** -0.5),
        out_shape=jax.ShapeDtypeStruct((B_, S, D), qkv.dtype),
        grid=grid,
        in_specs=[pl.BlockSpec((bblk, S, D3), lambda i: (i, 0, 0))],
        out_specs=pl.BlockSpec((bblk, S, D), lambda i: (i, 0, 0)),
        compiler_params=pltpu.CompilerParams(
            dimension_semantics=("parallel",),
            vmem_limit_bytes=_VMEM_LIMIT),
        cost_estimate=pl.CostEstimate(flops=int(4 * B_ * S * S * D),
                                      transcendentals=int(B_ * num_heads * S * S),
                                      bytes_accessed=bytes_accessed),
    )(qkv)


# --------------------------- model building blocks ----------------------------

def layer_forward(hs, lp, B, T, nH, nW, num_heads):
    """One TimesformerLayer, attention_type == 'divided_space_time'."""
    D = hs.shape[-1]
    np_ = nH * nW

    # ---- temporal attention (LN fused into QKV; residual fused into temporal_dense) ----
    temporal_in = hs[:, 1:, :]                                          # (B, np*T, D)
    t2d = temporal_in.reshape(B * np_ * T, D)
    qkv_t = pallas_ln_linear(t2d, lp["t_ln_g"], lp["t_ln_b"],
                             lp["t_qkv_w"], lp["t_qkv_b"])              # (B*np*T, 3D)
    ctx_t = pallas_attention(qkv_t.reshape(B * np_, T, 3 * D), num_heads)  # (B*np, T, D)
    proj_t = pallas_linear(ctx_t.reshape(-1, D), lp["t_proj_w"], lp["t_proj_b"])
    temporal_embedding = pallas_linear(proj_t, lp["t_dense_w"], lp["t_dense_b"],
                                       residual=t2d).reshape(B, np_ * T, D)

    # ---- spatial attention (LN fused into QKV) ----
    # TODO(synk): the permute/concat glue below stays in plain JAX; it could be
    # folded into BlockSpec index_maps of the consuming kernels for less HBM traffic.
    init_cls = hs[:, 0, :][:, None, :]                                   # (B,1,D)
    cls = jnp.broadcast_to(init_cls, (B, T, D)).reshape(B * T, 1, D)
    sp = (temporal_embedding.reshape(B, nH, nW, T, D)
          .transpose(0, 3, 1, 2, 4)
          .reshape(B * T, np_, D))
    sp = jnp.concatenate([cls, sp], axis=1)                              # (B*T, np+1, D)
    qkv_s = pallas_ln_linear(sp.reshape(-1, D), lp["ln1_g"], lp["ln1_b"],
                             lp["s_qkv_w"], lp["s_qkv_b"])               # (B*T*(np+1), 3D)
    ctx_s = pallas_attention(qkv_s.reshape(B * T, np_ + 1, 3 * D), num_heads)
    attn_s = pallas_linear(ctx_s.reshape(-1, D), lp["s_proj_w"], lp["s_proj_b"])
    attn_s = attn_s.reshape(B * T, np_ + 1, D)

    cls_tok = attn_s[:, 0, :].reshape(B, T, D).mean(axis=1, keepdims=True)   # (B,1,D)
    res_sp = (attn_s[:, 1:, :].reshape(B, T, nH, nW, D)
              .transpose(0, 2, 3, 1, 4)
              .reshape(B, np_ * T, D))
    hidden = (jnp.concatenate([init_cls, temporal_embedding], axis=1)
              + jnp.concatenate([cls_tok, res_sp], axis=1))              # (B, 1+np*T, D)

    # ---- MLP: LN + fc1 + exact-GELU fused; fc2 + residual fused ----
    h2d = hidden.reshape(-1, D)
    y = pallas_ln_linear(h2d, lp["ln2_g"], lp["ln2_b"],
                         lp["fc1_w"], lp["fc1_b"], activation="gelu")
    y = pallas_linear(y, lp["fc2_w"], lp["fc2_b"], residual=h2d)
    return y.reshape(hidden.shape)


def timesformer_forward(params, pixel_values, cfg):
    B, T, C, H, W = pixel_values.shape
    p = cfg["patch_size"]
    D = cfg["hidden"]
    nH, nW = H // p, W // p
    np_ = nH * nW

    # patch embedding: Conv2d(kernel=p, stride=p) == patch-flatten @ W
    x = pixel_values.reshape(B * T, C, nH, p, nW, p)
    x = x.transpose(0, 2, 4, 1, 3, 5).reshape(B * T * np_, C * p * p)
    x = x.astype(jnp.bfloat16)
    emb = pallas_linear(x, params["patch_w"], params["patch_b"]).reshape(B * T, np_, D)

    cls = jnp.broadcast_to(params["cls_token"], (B * T, 1, D))
    emb = jnp.concatenate([cls, emb], axis=1) + params["pos_emb"]        # (B*T, np+1, D)

    # time embeddings (divided_space_time)
    cls_tokens = emb[:B, 0, :][:, None, :]                               # (B,1,D)
    e = emb[:, 1:, :].reshape(B, T, np_, D).transpose(0, 2, 1, 3).reshape(B * np_, T, D)
    e = e + params["time_emb"]
    e = e.reshape(B, np_ * T, D)
    hidden_states = jnp.concatenate([cls_tokens, e], axis=1)             # (B, 1+np*T, D)

    for lp in params["layers"]:
        hidden_states = layer_forward(hidden_states, lp, B, T, nH, nW, cfg["num_heads"])

    # final LayerNorm is per-token and the classifier only reads token 0 -> fuse both
    logits = pallas_ln_linear(hidden_states[:, 0, :],
                              params["ln_f_g"], params["ln_f_b"],
                              params["clf_w"], params["clf_b"],
                              out_dtype=jnp.float32)                     # (B, num_classes)
    return logits


# ------------------------------- param init -----------------------------------

def _dense(key, fan_in, fan_out):
    kw, kb = jax.random.split(key)
    w = (jax.random.normal(kw, (fan_in, fan_out), jnp.float32) * 0.02).astype(jnp.bfloat16)
    b = jax.random.normal(kb, (fan_out,), jnp.float32) * 0.02            # biases kept f32
    return w, b


def init_params(key, cfg):
    # TODO(synk): pretrained 'facebook/timesformer-base-finetuned-k400' weights
    # cannot be fetched in-sandbox; random init with the same parameter structure.
    C, p, D = cfg["channels"], cfg["patch_size"], cfg["hidden"]
    T = cfg["num_frames"]
    np_ = (cfg["image_size"] // p) ** 2
    mlp = cfg["mlp"]
    keys = iter(jax.random.split(key, 8 + 12 * cfg["num_layers"]))

    params = {}
    params["patch_w"], params["patch_b"] = _dense(next(keys), C * p * p, D)
    params["cls_token"] = (jax.random.normal(next(keys), (1, 1, D), jnp.float32) * 0.02
                           ).astype(jnp.bfloat16)
    params["pos_emb"] = (jax.random.normal(next(keys), (1, np_ + 1, D), jnp.float32) * 0.02
                         ).astype(jnp.bfloat16)
    params["time_emb"] = (jax.random.normal(next(keys), (1, T, D), jnp.float32) * 0.02
                          ).astype(jnp.bfloat16)

    layers = []
    for _ in range(cfg["num_layers"]):
        lp = {}
        lp["t_ln_g"], lp["t_ln_b"] = jnp.ones((D,), jnp.float32), jnp.zeros((D,), jnp.float32)
        lp["t_qkv_w"], lp["t_qkv_b"] = _dense(next(keys), D, 3 * D)
        lp["t_proj_w"], lp["t_proj_b"] = _dense(next(keys), D, D)
        lp["t_dense_w"], lp["t_dense_b"] = _dense(next(keys), D, D)
        lp["ln1_g"], lp["ln1_b"] = jnp.ones((D,), jnp.float32), jnp.zeros((D,), jnp.float32)
        lp["s_qkv_w"], lp["s_qkv_b"] = _dense(next(keys), D, 3 * D)
        lp["s_proj_w"], lp["s_proj_b"] = _dense(next(keys), D, D)
        lp["ln2_g"], lp["ln2_b"] = jnp.ones((D,), jnp.float32), jnp.zeros((D,), jnp.float32)
        lp["fc1_w"], lp["fc1_b"] = _dense(next(keys), D, mlp)
        lp["fc2_w"], lp["fc2_b"] = _dense(next(keys), mlp, D)
        layers.append(lp)
    params["layers"] = layers

    params["ln_f_g"], params["ln_f_b"] = jnp.ones((D,), jnp.float32), jnp.zeros((D,), jnp.float32)
    params["clf_w"], params["clf_b"] = _dense(next(keys), D, cfg["num_classes"])
    return params


# ----------------------------------- main --------------------------------------

if __name__ == "__main__":
    cfg = dict(
        num_frames=2,
        image_size=16,
        patch_size=8,
        channels=3,
        hidden=32,
        num_heads=2,
        num_layers=2,
        mlp=128,
        num_classes=10,
    )

    root = jax.random.PRNGKey(0)
    k_in, k_par = jax.random.split(root)

    # images: (B, T, C, H, W) -- matches TimesformerModel pixel_values
    images = jax.random.normal(
        k_in,
        (2, cfg["num_frames"], cfg["channels"], cfg["image_size"], cfg["image_size"]),
        jnp.float32,
    )
    params = init_params(k_par, cfg)

    logits = timesformer_forward(params, images, cfg)
    logits = jax.block_until_ready(logits)
    assert logits.shape == (2, cfg["num_classes"])
    assert logits.dtype == jnp.float32
    print("KERNEL_OK")
</pallas_src>

<mosaic_0001>
module attributes {stable_mosaic.version = 11 : i64} {
  func.func @_linear_kernel(%arg0: i32, %arg1: i32, %arg2: memref<16x192xbf16, #tpu.memory_space<vmem>>, %arg3: memref<192x32xbf16, #tpu.memory_space<vmem>>, %arg4: memref<1x32xf32, #tpu.memory_space<vmem>>, %arg5: memref<16x32xbf16, #tpu.memory_space<vmem>>) attributes {dimension_semantics = [#tpu.dimension_semantics<parallel>, #tpu.dimension_semantics<parallel>], iteration_bounds = array<i64: 1, 1>, scalar_prefetch = 0 : i64, scratch_operands = 0 : i64, tpu.core_type = #tpu.core_type<tc>, window_params = [{transform_indices = @transform_0, window_bounds = array<i64: 16, 192>}, {transform_indices = @transform_1, window_bounds = array<i64: 192, 32>}, {transform_indices = @transform_2, window_bounds = array<i64: 1, 32>}, {transform_indices = @transform_3, window_bounds = array<i64: 16, 32>}]} {
    %c0 = arith.constant 0 : index
    %c0_0 = arith.constant 0 : index
    %0 = vector.load %arg2[%c0, %c0_0] : memref<16x192xbf16, #tpu.memory_space<vmem>>, vector<16x192xbf16>
    %c0_1 = arith.constant 0 : index
    %c0_2 = arith.constant 0 : index
    %1 = vector.load %arg3[%c0_1, %c0_2] : memref<192x32xbf16, #tpu.memory_space<vmem>>, vector<192x32xbf16>
    %cst = arith.constant dense<0.000000e+00> : vector<16x32xf32>
    %2 = tpu.matmul %0, %1, %cst {dimension_numbers = #tpu.dot_dimension_numbers<[1], [0], [0], [1], [0, 0, 1, 1], [], []>} : vector<16x192xbf16>, vector<192x32xbf16>, vector<16x32xf32> -> vector<16x32xf32>
    %c0_3 = arith.constant 0 : index
    %c0_4 = arith.constant 0 : index
    %3 = vector.load %arg4[%c0_3, %c0_4] : memref<1x32xf32, #tpu.memory_space<vmem>>, vector<1x32xf32>
    %4 = vector.broadcast %3 : vector<1x32xf32> to vector<16x32xf32>
    %5 = arith.addf %2, %4 : vector<16x32xf32>
    %6 = arith.truncf %5 : vector<16x32xf32> to vector<16x32xbf16>
    %c0_5 = arith.constant 0 : index
    %c0_6 = arith.constant 0 : index
    %7 = vector.load %arg5[%c0_5, %c0_6] : memref<16x32xbf16, #tpu.memory_space<vmem>>, vector<16x32xbf16>
    tpu.vector_store %arg5[%c0_5, %c0_6], %6 {strides = array<i32>} : memref<16x32xbf16, #tpu.memory_space<vmem>>, vector<16x32xbf16>,
    return
  }
  func.func @transform_0(%arg0: i32, %arg1: i32) -> (i32, i32) {
    %c0_i32 = arith.constant 0 : i32
    %c0_i32_0 = arith.constant 0 : i32
    return %arg0, %c0_i32 : i32, i32
  }
  func.func @transform_1(%arg0: i32, %arg1: i32) -> (i32, i32) {
    %c0_i32 = arith.constant 0 : i32
    %c0_i32_0 = arith.constant 0 : i32
    return %c0_i32, %arg1 : i32, i32
  }
  func.func @transform_2(%arg0: i32, %arg1: i32) -> (i32, i32) {
    %c0_i32 = arith.constant 0 : i32
    %c0_i32_0 = arith.constant 0 : i32
    return %c0_i32, %arg1 : i32, i32
  }
  func.func @transform_3(%arg0: i32, %arg1: i32) -> (i32, i32) {
    %c0_i32 = arith.constant 0 : i32
    return %arg0, %arg1 : i32, i32
  }
}

</mosaic_0001>

<llo_original>
// kernel: tpu_custom_call.1
$region0: #{tpu_custom_call.1}
  #allocation0 [shape = 'u32[]', space=smem, size = 0x4, offset = 0x4, fixed_abs, tag = 'smem constant byte address 0x4 - core index']
  #allocation1 [shape = 'u32[144,128]{1,0:T(1,128)}', space=vmem, size = 0x12000, scoped, tag = 'internal scratch']
  %s0 = inlined_call_operand.vmem [shape: bf16[16,192], index: 0, kind: input, shape index: {}]
  %s1 = inlined_call_operand.vmem [shape: bf16[192,32], index: 1, kind: input, shape index: {}]
  %s2 = inlined_call_operand.vmem [shape: f32[1,32], index: 2, kind: input, shape index: {}]
  %s3 = inlined_call_operand.hbm [shape: bf16[16,32], index: 3, kind: output, shape index: {}]
  %s4 = sld [smem:[#allocation0]]
  $region22: #{tpu_custom_call.1} parent=0
    _
  %s6 = ssub.s32 1, %s4
  %s7 = scalar_select 0, %s6, %s4
  $region1: #{tpu_custom_call.1} parent=0
    #allocation2 [shape = 'u8[4096]{0}', space=vmem, size = 0x1000, scoped, tag = 'output window, operand 0, single buffered']
    #allocation3 [shape = 's32[1]{0}', space=sflag, size = 0x4, scoped, tag = 'scoped memory for tpu_custom_call.1']
    %8 = vsyncpa [#allocation3], 0
    // Predicated region
    $region2: #{tpu_custom_call.1} parent=1 // pred_check
      _
    $region3: #{tpu_custom_call.1} parent=1 // pred_check_branch
      %10 = sbr.rel (0) target = $region5
    $region4: #{tpu_custom_call.1} parent=1 // pred_region
      _
    $region5: #{tpu_custom_call.1} parent=1 // pred_fallthru
      _
    // Predicated region
    $region6: #{tpu_custom_call.1} parent=1 // pred_check
      _
    $region7: #{tpu_custom_call.1} parent=1 // pred_check_branch
      %12 = sbr.rel (0) target = $region9
    $region8: #{tpu_custom_call.1} parent=1 // pred_region
      _
    $region9: #{tpu_custom_call.1} parent=1 // pred_fallthru
      _
    // Predicated region
    $region10: #{tpu_custom_call.1} parent=1 // pred_check
      _
    $region11: #{tpu_custom_call.1} parent=1 // pred_check_branch
      %14 = sbr.rel (0) target = $region13
    $region12: #{tpu_custom_call.1} parent=1 // pred_region
      _
    $region13: #{tpu_custom_call.1} parent=1 // pred_fallthru
      _
    %v16 = vld [vmem:[%s0] sm:$0xff]
    %v17 = vld [vmem:[%s0 + $0x8] sm:$0xff]
    %v18 = vld [vmem:[%s1] sm:$0xf]
    %v19 = vld [vmem:[%s1 + $0x4] sm:$0xf]
    %v20 = vld [vmem:[%s1 + $0x8] sm:$0xf]
    %v21 = vld [vmem:[%s1 + $0xc] sm:$0xf]
    %v22 = vld [vmem:[%s1 + $0x10] sm:$0xf]
    %v23 = vld [vmem:[%s1 + $0x14] sm:$0xf]
    %v24 = vld [vmem:[%s1 + $0x18] sm:$0xf]
    %v25 = vld [vmem:[%s1 + $0x1c] sm:$0xf]
    %v26 = vld [vmem:[%s1 + $0x20] sm:$0xf]
    %v27 = vld [vmem:[%s1 + $0x24] sm:$0xf]
    %v28 = vld [vmem:[%s1 + $0x28] sm:$0xf]
    %v29 = vld [vmem:[%s1 + $0x2c] sm:$0xf]
    %v30 = vld [vmem:[%s1 + $0x30] sm:$0xf]
    %v31 = vld [vmem:[%s1 + $0x34] sm:$0xf]
    %v32 = vld [vmem:[%s1 + $0x38] sm:$0xf]
    %v33 = vld [vmem:[%s1 + $0x3c] sm:$0xf]
    %v34 = vld [vmem:[%s1 + $0x40] sm:$0xf]
    %v35 = vld [vmem:[%s1 + $0x44] sm:$0xf]
    %v36 = vld [vmem:[%s1 + $0x48] sm:$0xf]
    %v37 = vld [vmem:[%s1 + $0x4c] sm:$0xf]
    %v38 = vld [vmem:[%s1 + $0x50] sm:$0xf]
    %v39 = vld [vmem:[%s1 + $0x54] sm:$0xf]
    %v40 = vld [vmem:[%s1 + $0x58] sm:$0xf]
    %v41 = vld [vmem:[%s1 + $0x5c] sm:$0xf]
    %v42 = vld [vmem:[%s2] sm:$0x1]
    %v44 = vlaneseq
    %v45 = vshrl.u32 %v44, 7
    %v46 = vsub.s32 0, %v45
    %v47 = vrot.slane %v42, %v46
    %v51 = vunpack.c.l.b16 %v16
    %v52 = vunpack.c.h.b16 %v16
    %v53 = vunpack.c.l.b16 %v17
    %v54 = vunpack.c.h.b16 %v17
    %v55 = vpack.c.b16 %v53, %v51
    %v56 = vpack.c.b16 %v54, %v52
    %v82 = vunpack.c.l.b16 %v18
    %v83 = vunpack.c.l.b16 %v19
    %v84 = vunpack.c.l.b16 %v20
    %v85 = vunpack.c.l.b16 %v21
    %v86 = vunpack.c.l.b16 %v22
    %v87 = vunpack.c.l.b16 %v23
    %v88 = vunpack.c.l.b16 %v24
    %v89 = vunpack.c.l.b16 %v25
    %v90 = vunpack.c.l.b16 %v26
    %v91 = vunpack.c.l.b16 %v27
    %v92 = vunpack.c.l.b16 %v28
    %v93 = vunpack.c.l.b16 %v29
    %v94 = vunpack.c.l.b16 %v30
    %v95 = vunpack.c.l.b16 %v31
    %v96 = vunpack.c.l.b16 %v32
    %v97 = vunpack.c.l.b16 %v33
    %v98 = vunpack.c.l.b16 %v34
    %v99 = vunpack.c.l.b16 %v35
    %v100 = vunpack.c.l.b16 %v36
    %v101 = vunpack.c.l.b16 %v37
    %v102 = vunpack.c.l.b16 %v38
    %v103 = vunpack.c.l.b16 %v39
    %v104 = vunpack.c.l.b16 %v40
    %v105 = vunpack.c.l.b16 %v41
    %v106 = vpack.c.b16 %v83, %v82
    %v107 = vpack.c.b16 %v85, %v84
    %v108 = vpack.c.b16 %v87, %v86
    %v109 = vpack.c.b16 %v89, %v88
    %v110 = vpack.c.b16 %v91, %v90
    %v111 = vpack.c.b16 %v93, %v92
    %v112 = vpack.c.b16 %v95, %v94
    %v113 = vpack.c.b16 %v97, %v96
    %v114 = vpack.c.b16 %v99, %v98
    %v115 = vpack.c.b16 %v101, %v100
    %v116 = vpack.c.b16 %v103, %v102
    %v117 = vpack.c.b16 %v105, %v104
    %vm130 = vcmask 523264
    %v132 = vsel %vm130, %v56, 0
    %134 = vmatprep.subr.bf16.mxu0 0
    %135 = vmatpush1.bf16.msra.mxu0 %v106
    %136 = vmatprep.subr.bf16.mxu0 0
    %137 = vmatpush1.bf16.msra.mxu0 %v107
    %138 = vmatprep.subr.bf16.mxu0 0
    %139 = vmatpush1.bf16.msra.mxu0 %v108
    %140 = vmatprep.subr.bf16.mxu0 0
    %141 = vmatpush1.bf16.msra.mxu0 %v109
    %142 = vmatprep.subr.bf16.mxu0 0
    %143 = vmatpush1.bf16.msra.mxu0 %v110
    %144 = vmatprep.subr.bf16.mxu0 0
    %145 = vmatpush1.bf16.msra.mxu0 %v111
    %146 = vmatprep.subr.bf16.mxu0 0
    %147 = vmatpush1.bf16.msra.mxu0 %v112
    %148 = vmatprep.subr.bf16.mxu0 0
    %149 = vmatpush1.bf16.msra.mxu0 %v113
    %150 = vmatprep.subr.bf16.mxu0 0
    %151 = vmatpush1.bf16.msra.mxu0 %v114
    %152 = vmatprep.subr.bf16.mxu0 0
    %153 = vmatpush1.bf16.msra.mxu0 %v115
    %154 = vmatprep.subr.bf16.mxu0 0
    %155 = vmatpush1.bf16.msra.mxu0 %v116
    %156 = vmatprep.subr.bf16.mxu0 0
    %157 = vmatpush1.bf16.msra.mxu0 %v117
    %158 = vmatprep.subr.bf16.mxu0 0
    %159 = vmatpush1.bf16.msra.mxu0 0
    %160 = vmatprep.subr.bf16.mxu0 0
    %161 = vmatpush1.bf16.msra.mxu0 0
    %162 = vmatprep.subr.bf16.mxu0 0
    %163 = vmatpush1.bf16.msra.mxu0 0
    %164 = vmatprep.subr.bf16.mxu0 0
    %165 = vmatpush1.bf16.msra.mxu0 0
    %166 = vmatprep.mubr.bf16.mxu0 %v132
    %167 = vmatmul.mubr.bf16.gmra.mrb[0].mxu0 %v55
    %v168 = vpop.f32.mrb[0].mxu0
    %v169 = vadd.f32 %v47, %v168
    %v170 = vpop.f32.mrb[0].mxu0
    %v171 = vpop.f32.mrb[0].mxu0
    %v172 = vadd.f32 %v47, %v171
    %v173 = vpop.f32.mrb[0].mxu0
    %174 = vdwg.mxu0
    %v175 = vpack.c.bf16 %v172, %v169
    %v177 = vunpack.c.l.b16 %v175
    %v178 = vunpack.c.h.b16 %v175
    %v179 = vpack.c.b16 %v177, %v177
    %v180 = vpack.c.b16 %v178, %v178
    %vm183 = vcmask 257024
    %184 = vst.msk [vmem:[#allocation2] sm:$0xf] %vm183, %v179
    %185 = vst.msk [vmem:[#allocation2 + $0x4] sm:$0xf] %vm183, %v180
    // Predicated region
    $region14: #{tpu_custom_call.1} parent=1 // pred_check
      _
    $region15: #{tpu_custom_call.1} parent=1 // pred_check_branch
      %187 = sbr.rel (0) target = $region17
    $region16: #{tpu_custom_call.1} parent=1 // pred_region
      %s189 = ssub.s32 128, 128
      %190 = vsyncadd [#allocation3], %s189
      %s191 = sshll.u32 [#allocation2], 4
      %s192 = int_to_ptr.vmem [resolvable:$true] %s191
      %197 = dma.vmem_to_hbm [thread:$0]  %s192, 128, %s3, [#allocation3], 64, 64, 4
    $region17: #{tpu_custom_call.1} parent=1 // pred_fallthru
      _
    // Predicated region
    $region18: #{tpu_custom_call.1} parent=1 // pred_check
      _
    $region19: #{tpu_custom_call.1} parent=1 // pred_check_branch
      %199 = sbr.rel (0) target = $region21
    $region20: #{tpu_custom_call.1} parent=1 // pred_region
      %200 = dma.done [#allocation3], 128
    $region21: #{tpu_custom_call.1} parent=1 // pred_fallthru
      _
    %201 = vsyncpa [#allocation3], 1

</llo_original>
